<compile_context>
chip_gen: v7x
topology: tpu7x:2x2x1
jax: 0.10.0
libtpu: 0.0.40
codegen_flags: <defaults>
</compile_context>

<pallas_src>
import functools

import jax
import jax.numpy as jnp
from jax.experimental import pallas as pl
from jax.experimental.pallas import tpu as pltpu

LEAKY_SLOPE = 0.01   # PyTorch nn.LeakyReLU() default negative_slope
LANE = 128


def _round_up(x, m):
    return ((x + m - 1) // m) * m


def _sublane(dtype):
    # bf16 packs two rows per 32-bit sublane -> round batch tiles to 16, f32 to 8.
    return 16 if jnp.dtype(dtype).itemsize == 2 else 8


def _vmem_limit_bytes():
    """Per-generation scoped-VMEM limit, leaving headroom for compiler scratch."""
    try:
        cap = pltpu.get_tpu_info().vmem_capacity_bytes
    except Exception:
        cap = 64 << 20                       # conservative (v7x-sized) fallback
    # ~100 MiB on 128-MiB v5e/v6e, ~48 MiB on 64-MiB v7x.
    return int(max(32 << 20, min(cap - (16 << 20), 100 << 20)))


def _fused_mlp_kernel(x_ref, *refs, num_layers):
    """refs = (w0, b0, w1, b1, ..., w_{L-1}, b_{L-1}, o_ref).

    The whole MLP runs back-to-back; intermediates never leave VMEM/vregs.
    Matmuls run on the MXU in the weight storage dtype (bf16 fast path / f32
    debug path) and accumulate in f32; bias + LeakyReLU stay in f32; only the
    final store casts to the output dtype.
    """
    o_ref = refs[-1]
    compute_dtype = refs[0].dtype
    h = x_ref[...].astype(compute_dtype)
    for i in range(num_layers):
        w_ref = refs[2 * i]
        b_ref = refs[2 * i + 1]
        y = jnp.dot(h, w_ref[...], preferred_element_type=jnp.float32)
        y = y + b_ref[...]                           # bias add in f32
        if i < num_layers - 1:
            y = jnp.maximum(y, LEAKY_SLOPE * y)      # LeakyReLU (slope < 1)
            h = y.astype(compute_dtype)              # next matmul in storage dtype
        else:
            h = y
    o_ref[...] = h.astype(o_ref.dtype)


def init_mlp_params(key, input_size, output_size, layers):
    """PyTorch-like init: U(-1/sqrt(fan_in), 1/sqrt(fan_in)); weights stored (fan_in, fan_out)."""
    sizes = [input_size] + list(layers) + [output_size]
    params = []
    for i in range(len(sizes) - 1):
        fan_in, fan_out = sizes[i], sizes[i + 1]
        key, kw, kb = jax.random.split(key, 3)
        bound = 1.0 / jnp.sqrt(jnp.float32(fan_in))
        w_t = jax.random.uniform(kw, (fan_in, fan_out), jnp.float32, -bound, bound)
        b = jax.random.uniform(kb, (1, fan_out), jnp.float32, -bound, bound)
        params.append((w_t, b))
    return params


def pad_params(params, weight_dtype=jnp.bfloat16):
    """Zero-pad every feature dim to a multiple of 128 lanes.

    Zero padding is semantics-preserving: padded x columns are 0, padded weight
    rows/cols and bias entries are 0, so padded output columns stay 0 through
    LeakyReLU (leaky(0)=0) and never contaminate real columns of later layers.
    Biases stay f32 (tiny; the epilogue runs in f32 anyway).
    """
    padded = []
    for (w_t, b) in params:
        fi, fo = w_t.shape
        fi_p, fo_p = _round_up(fi, LANE), _round_up(fo, LANE)
        w_p = jnp.zeros((fi_p, fo_p), weight_dtype).at[:fi, :fo].set(w_t.astype(weight_dtype))
        b_p = jnp.zeros((1, fo_p), jnp.float32).at[:, :fo].set(b)
        padded.append((w_p, b_p))
    return padded


def mlp_forward(padded_params, x, out_size, *, block_batch=512):
    """Fused Pallas MLP forward. x: (B, in_features) -> (B, out_size) in x.dtype."""
    B, IN = x.shape
    num_layers = len(padded_params)
    w_dtype = padded_params[0][0].dtype
    in_pad0 = padded_params[0][0].shape[0]
    out_pad_last = padded_params[-1][0].shape[1]
    assert IN <= in_pad0

    vmem_limit = _vmem_limit_bytes()
    sub = _sublane(w_dtype)

    # ---- batch tile selection -----------------------------------------------
    tm_full = _round_up(B, sub)
    tm = min(_round_up(block_batch, sub), tm_full)
    # v7x megacore: if everything fits one tile but it splits into two equal
    # halves at zero padding cost, split so the 2nd TensorCore gets work
    # (no-op on single-TC v5e/v6e beyond one extra cheap grid step).
    if tm == tm_full and tm_full >= 64 and tm_full % (2 * sub) == 0:
        tm = tm_full // 2

    # Shrink tm if per-step VMEM footprint (single-buffered weights + worst-case
    # f32 intermediates + double-buffered x/out tiles) would blow the budget.
    w_bytes = sum(w.size * w.dtype.itemsize + b.size * b.dtype.itemsize
                  for (w, b) in padded_params)
    widths = [in_pad0] + [w.shape[1] for (w, _) in padded_params]
    act_itemsize = jnp.dtype(w_dtype).itemsize
    out_itemsize = jnp.dtype(x.dtype).itemsize

    def footprint(t):
        interm = 2 * t * max(widths) * 4                      # two live f32 intermediates
        io = 2 * t * in_pad0 * act_itemsize + 2 * t * out_pad_last * out_itemsize
        return w_bytes + interm + io

    while tm > sub and footprint(tm) > int(0.8 * vmem_limit):
        tm = _round_up(tm // 2, sub)

    b_pad = _round_up(B, tm)

    # ---- input staging: skip the extra HBM pad/cast op when already aligned ---
    if b_pad == B and in_pad0 == IN:
        x_in = x                       # storage-dtype cast happens inside the kernel
    else:
        x_in = jnp.zeros((b_pad, in_pad0), w_dtype).at[:B, :IN].set(x.astype(w_dtype))

    # ---- cost estimate ---------------------------------------------------------
    flops = 0
    bytes_accessed = x_in.size * x_in.dtype.itemsize
    for (w_t, b) in padded_params:
        ip, op = w_t.shape
        flops += 2 * b_pad * ip * op
        bytes_accessed += w_t.size * w_t.dtype.itemsize + b.size * b.dtype.itemsize
    bytes_accessed += b_pad * out_pad_last * out_itemsize

    kernel = functools.partial(_fused_mlp_kernel, num_layers=num_layers)

    def _const_map(i):
        return (0, 0)

    def _run(single_buffer_consts):
        in_specs = [pl.BlockSpec((tm, in_pad0), lambda i: (i, 0))]
        flat_args = [x_in]
        for (w_t, b) in padded_params:
            ip, op = w_t.shape
            # Whole-layer weight/bias blocks resident in VMEM, reused by every
            # batch tile. Constant index_map -> never re-fetched; single-buffer
            # them so they don't pay the default 2x pipeline allocation.
            # TODO(synk): for layers whose padded weights exceed the per-layer
            # VMEM budget (~20 MiB on v7x / ~40 MiB on v5e,v6e), add K/N grid
            # axes with an f32 accumulator scratch instead of whole-layer blocks.
            if single_buffer_consts:
                w_spec = pl.BlockSpec((ip, op), _const_map, pipeline_mode=pl.Buffered(1))
                b_spec = pl.BlockSpec((1, op), _const_map, pipeline_mode=pl.Buffered(1))
            else:
                w_spec = pl.BlockSpec((ip, op), _const_map)
                b_spec = pl.BlockSpec((1, op), _const_map)
            in_specs += [w_spec, b_spec]
            flat_args += [w_t, b]

        return pl.pallas_call(
            kernel,
            out_shape=jax.ShapeDtypeStruct((b_pad, out_pad_last), x.dtype),
            grid_spec=pltpu.PrefetchScalarGridSpec(
                num_scalar_prefetch=0,
                grid=(b_pad // tm,),
                in_specs=in_specs,
                out_specs=pl.BlockSpec((tm, out_pad_last), lambda i: (i, 0)),
            ),
            compiler_params=pltpu.CompilerParams(
                # Batch tiles are independent -> shard across v7x's 2 TensorCores.
                dimension_semantics=("parallel",),
                vmem_limit_bytes=vmem_limit,
            ),
            cost_estimate=pl.CostEstimate(
                flops=int(flops),
                transcendentals=0,
                bytes_accessed=int(bytes_accessed),
            ),
        )(*flat_args)

    try:
        out_padded = _run(single_buffer_consts=True)
    except Exception:
        # pipeline_mode/Buffered(1) not supported on this jax version ->
        # fall back to default double-buffered constant blocks.
        out_padded = _run(single_buffer_consts=False)

    return out_padded[:B, :out_size]


def mlp_reference(params, x):
    """Pure-JAX reference (unpadded f32 params)."""
    n = len(params)
    h = x
    for i, (w_t, b) in enumerate(params):
        h = h @ w_t + b
        if i < n - 1:
            h = jnp.where(h >= 0, h, LEAKY_SLOPE * h)
    return h


if __name__ == "__main__":
    # Small shapes consistent with MLP(input_size, output_size, layers)
    input_size = 32
    output_size = 16
    layers = [64, 64]
    batch = 8

    key = jax.random.PRNGKey(0)
    key, kx = jax.random.split(key)
    x = jax.random.normal(kx, (batch, input_size), jnp.float32)

    params = init_mlp_params(key, input_size, output_size, layers)
    ref = mlp_reference(params, x)

    # Default fast path: bf16 weight/activation storage, f32 accumulation + f32 epilogue.
    out_bf16 = jax.block_until_ready(mlp_forward(pad_params(params), x, output_size))
    assert out_bf16.shape == (batch, output_size)
    assert jnp.allclose(out_bf16, ref, atol=5e-2, rtol=5e-2), \
        "bf16 Pallas MLP mismatch vs reference"

    # f32 debug/reference storage path (default MXU precision; tolerance-checked,
    # not bit-exact).
    out_f32 = jax.block_until_ready(
        mlp_forward(pad_params(params, jnp.float32), x, output_size))
    assert out_f32.shape == (batch, output_size)
    assert jnp.allclose(out_f32, ref, atol=1e-4, rtol=1e-4), \
        "f32 Pallas MLP mismatch vs reference"

    print("KERNEL_OK")
</pallas_src>

<mosaic_0001>
module attributes {stable_mosaic.version = 11 : i64} {
  func.func @_fused_mlp_kernel(%arg0: i32, %arg1: memref<16x128xbf16, #tpu.memory_space<vmem>>, %arg2: memref<128x128xbf16, #tpu.memory_space<vmem>>, %arg3: memref<1x128xf32, #tpu.memory_space<vmem>>, %arg4: memref<128x128xbf16, #tpu.memory_space<vmem>>, %arg5: memref<1x128xf32, #tpu.memory_space<vmem>>, %arg6: memref<128x128xbf16, #tpu.memory_space<vmem>>, %arg7: memref<1x128xf32, #tpu.memory_space<vmem>>, %arg8: memref<16x128xf32, #tpu.memory_space<vmem>>) attributes {dimension_semantics = [#tpu.dimension_semantics<parallel>], iteration_bounds = array<i64: 1>, scalar_prefetch = 0 : i64, scratch_operands = 0 : i64, tpu.core_type = #tpu.core_type<tc>, window_params = [{transform_indices = @transform_0, window_bounds = array<i64: 16, 128>}, {pipeline_mode = #tpu.pipeline_mode<synchronous>, transform_indices = @transform_1, window_bounds = array<i64: 128, 128>}, {pipeline_mode = #tpu.pipeline_mode<synchronous>, transform_indices = @transform_2, window_bounds = array<i64: 1, 128>}, {pipeline_mode = #tpu.pipeline_mode<synchronous>, transform_indices = @transform_3, window_bounds = array<i64: 128, 128>}, {pipeline_mode = #tpu.pipeline_mode<synchronous>, transform_indices = @transform_4, window_bounds = array<i64: 1, 128>}, {pipeline_mode = #tpu.pipeline_mode<synchronous>, transform_indices = @transform_5, window_bounds = array<i64: 128, 128>}, {pipeline_mode = #tpu.pipeline_mode<synchronous>, transform_indices = @transform_6, window_bounds = array<i64: 1, 128>}, {transform_indices = @transform_7, window_bounds = array<i64: 16, 128>}]} {
    %c0 = arith.constant 0 : index
    %c0_0 = arith.constant 0 : index
    %0 = vector.load %arg1[%c0, %c0_0] : memref<16x128xbf16, #tpu.memory_space<vmem>>, vector<16x128xbf16>
    %c0_1 = arith.constant 0 : index
    %c0_2 = arith.constant 0 : index
    %1 = vector.load %arg2[%c0_1, %c0_2] : memref<128x128xbf16, #tpu.memory_space<vmem>>, vector<128x128xbf16>
    %cst = arith.constant dense<0.000000e+00> : vector<16x128xf32>
    %2 = tpu.matmul %0, %1, %cst {dimension_numbers = #tpu.dot_dimension_numbers<[1], [0], [0], [1], [0, 0, 1, 1], [], []>} : vector<16x128xbf16>, vector<128x128xbf16>, vector<16x128xf32> -> vector<16x128xf32>
    %c0_3 = arith.constant 0 : index
    %c0_4 = arith.constant 0 : index
    %3 = vector.load %arg3[%c0_3, %c0_4] : memref<1x128xf32, #tpu.memory_space<vmem>>, vector<1x128xf32>
    %4 = vector.broadcast %3 : vector<1x128xf32> to vector<16x128xf32>
    %5 = arith.addf %2, %4 : vector<16x128xf32>
    %cst_5 = arith.constant 0.00999999977 : f32
    %6 = vector.broadcast %cst_5 : f32 to vector<16x128xf32>
    %7 = arith.mulf %6, %5 : vector<16x128xf32>
    %8 = arith.maximumf %5, %7 : vector<16x128xf32>
    %9 = arith.truncf %8 : vector<16x128xf32> to vector<16x128xbf16>
    %c0_6 = arith.constant 0 : index
    %c0_7 = arith.constant 0 : index
    %10 = vector.load %arg4[%c0_6, %c0_7] : memref<128x128xbf16, #tpu.memory_space<vmem>>, vector<128x128xbf16>
    %cst_8 = arith.constant dense<0.000000e+00> : vector<16x128xf32>
    %11 = tpu.matmul %9, %10, %cst_8 {dimension_numbers = #tpu.dot_dimension_numbers<[1], [0], [0], [1], [0, 0, 1, 1], [], []>} : vector<16x128xbf16>, vector<128x128xbf16>, vector<16x128xf32> -> vector<16x128xf32>
    %c0_9 = arith.constant 0 : index
    %c0_10 = arith.constant 0 : index
    %12 = vector.load %arg5[%c0_9, %c0_10] : memref<1x128xf32, #tpu.memory_space<vmem>>, vector<1x128xf32>
    %13 = vector.broadcast %12 : vector<1x128xf32> to vector<16x128xf32>
    %14 = arith.addf %11, %13 : vector<16x128xf32>
    %cst_11 = arith.constant 0.00999999977 : f32
    %15 = vector.broadcast %cst_11 : f32 to vector<16x128xf32>
    %16 = arith.mulf %15, %14 : vector<16x128xf32>
    %17 = arith.maximumf %14, %16 : vector<16x128xf32>
    %18 = arith.truncf %17 : vector<16x128xf32> to vector<16x128xbf16>
    %c0_12 = arith.constant 0 : index
    %c0_13 = arith.constant 0 : index
    %19 = vector.load %arg6[%c0_12, %c0_13] : memref<128x128xbf16, #tpu.memory_space<vmem>>, vector<128x128xbf16>
    %cst_14 = arith.constant dense<0.000000e+00> : vector<16x128xf32>
    %20 = tpu.matmul %18, %19, %cst_14 {dimension_numbers = #tpu.dot_dimension_numbers<[1], [0], [0], [1], [0, 0, 1, 1], [], []>} : vector<16x128xbf16>, vector<128x128xbf16>, vector<16x128xf32> -> vector<16x128xf32>
    %c0_15 = arith.constant 0 : index
    %c0_16 = arith.constant 0 : index
    %21 = vector.load %arg7[%c0_15, %c0_16] : memref<1x128xf32, #tpu.memory_space<vmem>>, vector<1x128xf32>
    %22 = vector.broadcast %21 : vector<1x128xf32> to vector<16x128xf32>
    %23 = arith.addf %20, %22 : vector<16x128xf32>
    %c0_17 = arith.constant 0 : index
    %c0_18 = arith.constant 0 : index
    %24 = vector.load %arg8[%c0_17, %c0_18] : memref<16x128xf32, #tpu.memory_space<vmem>>, vector<16x128xf32>
    tpu.vector_store %arg8[%c0_17, %c0_18], %23 {strides = array<i32>} : memref<16x128xf32, #tpu.memory_space<vmem>>, vector<16x128xf32>,
    return
  }
  func.func @transform_0(%arg0: i32) -> (i32, i32) {
    %c0_i32 = arith.constant 0 : i32
    %c0_i32_0 = arith.constant 0 : i32
    return %arg0, %c0_i32 : i32, i32
  }
  func.func @transform_1(%arg0: i32) -> (i32, i32) {
    %c0_i32 = arith.constant 0 : i32
    %c0_i32_0 = arith.constant 0 : i32
    %c0_i32_1 = arith.constant 0 : i32
    return %c0_i32, %c0_i32_0 : i32, i32
  }
  func.func @transform_2(%arg0: i32) -> (i32, i32) {
    %c0_i32 = arith.constant 0 : i32
    %c0_i32_0 = arith.constant 0 : i32
    %c0_i32_1 = arith.constant 0 : i32
    return %c0_i32, %c0_i32_0 : i32, i32
  }
  func.func @transform_3(%arg0: i32) -> (i32, i32) {
    %c0_i32 = arith.constant 0 : i32
    %c0_i32_0 = arith.constant 0 : i32
    %c0_i32_1 = arith.constant 0 : i32
    return %c0_i32, %c0_i32_0 : i32, i32
  }
  func.func @transform_4(%arg0: i32) -> (i32, i32) {
    %c0_i32 = arith.constant 0 : i32
    %c0_i32_0 = arith.constant 0 : i32
    %c0_i32_1 = arith.constant 0 : i32
    return %c0_i32, %c0_i32_0 : i32, i32
  }
  func.func @transform_5(%arg0: i32) -> (i32, i32) {
    %c0_i32 = arith.constant 0 : i32
    %c0_i32_0 = arith.constant 0 : i32
    %c0_i32_1 = arith.constant 0 : i32
    return %c0_i32, %c0_i32_0 : i32, i32
  }
  func.func @transform_6(%arg0: i32) -> (i32, i32) {
    %c0_i32 = arith.constant 0 : i32
    %c0_i32_0 = arith.constant 0 : i32
    %c0_i32_1 = arith.constant 0 : i32
    return %c0_i32, %c0_i32_0 : i32, i32
  }
  func.func @transform_7(%arg0: i32) -> (i32, i32) {
    %c0_i32 = arith.constant 0 : i32
    %c0_i32_0 = arith.constant 0 : i32
    return %arg0, %c0_i32 : i32, i32
  }
}

module attributes {stable_mosaic.version = 11 : i64} {
  func.func @_fused_mlp_kernel(%arg0: i32, %arg1: memref<16x128xbf16, #tpu.memory_space<vmem>>, %arg2: memref<128x128xbf16, #tpu.memory_space<vmem>>, %arg3: memref<1x128xf32, #tpu.memory_space<vmem>>, %arg4: memref<128x128xbf16, #tpu.memory_space<vmem>>, %arg5: memref<1x128xf32, #tpu.memory_space<vmem>>, %arg6: memref<128x128xbf16, #tpu.memory_space<vmem>>, %arg7: memref<1x128xf32, #tpu.memory_space<vmem>>, %arg8: memref<16x128xf32, #tpu.memory_space<vmem>>) attributes {dimension_semantics = [#tpu.dimension_semantics<parallel>], iteration_bounds = array<i64: 1>, scalar_prefetch = 0 : i64, scratch_operands = 0 : i64, tpu.core_type = #tpu.core_type<tc>, window_params = [{transform_indices = @transform_0, window_bounds = array<i64: 16, 128>}, {pipeline_mode = #tpu.pipeline_mode<synchronous>, transform_indices = @transform_1, window_bounds = array<i64: 128, 128>}, {pipeline_mode = #tpu.pipeline_mode<synchronous>, transform_indices = @transform_2, window_bounds = array<i64: 1, 128>}, {pipeline_mode = #tpu.pipeline_mode<synchronous>, transform_indices = @transform_3, window_bounds = array<i64: 128, 128>}, {pipeline_mode = #tpu.pipeline_mode<synchronous>, transform_indices = @transform_4, window_bounds = array<i64: 1, 128>}, {pipeline_mode = #tpu.pipeline_mode<synchronous>, transform_indices = @transform_5, window_bounds = array<i64: 128, 128>}, {pipeline_mode = #tpu.pipeline_mode<synchronous>, transform_indices = @transform_6, window_bounds = array<i64: 1, 128>}, {transform_indices = @transform_7, window_bounds = array<i64: 16, 128>}]} {
    %c0 = arith.constant 0 : index
    %c0_0 = arith.constant 0 : index
    %0 = vector.load %arg1[%c0, %c0_0] : memref<16x128xbf16, #tpu.memory_space<vmem>>, vector<16x128xbf16>
    %c0_1 = arith.constant 0 : index
    %c0_2 = arith.constant 0 : index
    %1 = vector.load %arg2[%c0_1, %c0_2] : memref<128x128xbf16, #tpu.memory_space<vmem>>, vector<128x128xbf16>
    %cst = arith.constant dense<0.000000e+00> : vector<16x128xf32>
    %2 = tpu.matmul %0, %1, %cst {dimension_numbers = #tpu.dot_dimension_numbers<[1], [0], [0], [1], [0, 0, 1, 1], [], []>} : vector<16x128xbf16>, vector<128x128xbf16>, vector<16x128xf32> -> vector<16x128xf32>
    %c0_3 = arith.constant 0 : index
    %c0_4 = arith.constant 0 : index
    %3 = vector.load %arg3[%c0_3, %c0_4] : memref<1x128xf32, #tpu.memory_space<vmem>>, vector<1x128xf32>
    %4 = vector.broadcast %3 : vector<1x128xf32> to vector<16x128xf32>
    %5 = arith.addf %2, %4 : vector<16x128xf32>
    %cst_5 = arith.constant 0.00999999977 : f32
    %6 = vector.broadcast %cst_5 : f32 to vector<16x128xf32>
    %7 = arith.mulf %6, %5 : vector<16x128xf32>
    %8 = arith.maximumf %5, %7 : vector<16x128xf32>
    %9 = arith.truncf %8 : vector<16x128xf32> to vector<16x128xbf16>
    %c0_6 = arith.constant 0 : index
    %c0_7 = arith.constant 0 : index
    %10 = vector.load %arg4[%c0_6, %c0_7] : memref<128x128xbf16, #tpu.memory_space<vmem>>, vector<128x128xbf16>
    %cst_8 = arith.constant dense<0.000000e+00> : vector<16x128xf32>
    %11 = tpu.matmul %9, %10, %cst_8 {dimension_numbers = #tpu.dot_dimension_numbers<[1], [0], [0], [1], [0, 0, 1, 1], [], []>} : vector<16x128xbf16>, vector<128x128xbf16>, vector<16x128xf32> -> vector<16x128xf32>
    %c0_9 = arith.constant 0 : index
    %c0_10 = arith.constant 0 : index
    %12 = vector.load %arg5[%c0_9, %c0_10] : memref<1x128xf32, #tpu.memory_space<vmem>>, vector<1x128xf32>
    %13 = vector.broadcast %12 : vector<1x128xf32> to vector<16x128xf32>
    %14 = arith.addf %11, %13 : vector<16x128xf32>
    %cst_11 = arith.constant 0.00999999977 : f32
    %15 = vector.broadcast %cst_11 : f32 to vector<16x128xf32>
    %16 = arith.mulf %15, %14 : vector<16x128xf32>
    %17 = arith.maximumf %14, %16 : vector<16x128xf32>
    %18 = arith.truncf %17 : vector<16x128xf32> to vector<16x128xbf16>
    %c0_12 = arith.constant 0 : index
    %c0_13 = arith.constant 0 : index
    %19 = vector.load %arg6[%c0_12, %c0_13] : memref<128x128xbf16, #tpu.memory_space<vmem>>, vector<128x128xbf16>
    %cst_14 = arith.constant dense<0.000000e+00> : vector<16x128xf32>
    %20 = tpu.matmul %18, %19, %cst_14 {dimension_numbers = #tpu.dot_dimension_numbers<[1], [0], [0], [1], [0, 0, 1, 1], [], []>} : vector<16x128xbf16>, vector<128x128xbf16>, vector<16x128xf32> -> vector<16x128xf32>
    %c0_15 = arith.constant 0 : index
    %c0_16 = arith.constant 0 : index
    %21 = vector.load %arg7[%c0_15, %c0_16] : memref<1x128xf32, #tpu.memory_space<vmem>>, vector<1x128xf32>
    %22 = vector.broadcast %21 : vector<1x128xf32> to vector<16x128xf32>
    %23 = arith.addf %20, %22 : vector<16x128xf32>
    %c0_17 = arith.constant 0 : index
    %c0_18 = arith.constant 0 : index
    %24 = vector.load %arg8[%c0_17, %c0_18] : memref<16x128xf32, #tpu.memory_space<vmem>>, vector<16x128xf32>
    tpu.vector_store %arg8[%c0_17, %c0_18], %23 {strides = array<i32>} : memref<16x128xf32, #tpu.memory_space<vmem>>, vector<16x128xf32>,
    return
  }
  func.func @transform_0(%arg0: i32) -> (i32, i32) {
    %c0_i32 = arith.constant 0 : i32
    %c0_i32_0 = arith.constant 0 : i32
    return %arg0, %c0_i32 : i32, i32
  }
  func.func @transform_1(%arg0: i32) -> (i32, i32) {
    %c0_i32 = arith.constant 0 : i32
    %c0_i32_0 = arith.constant 0 : i32
    %c0_i32_1 = arith.constant 0 : i32
    return %c0_i32, %c0_i32_0 : i32, i32
  }
  func.func @transform_2(%arg0: i32) -> (i32, i32) {
    %c0_i32 = arith.constant 0 : i32
    %c0_i32_0 = arith.constant 0 : i32
    %c0_i32_1 = arith.constant 0 : i32
    return %c0_i32, %c0_i32_0 : i32, i32
  }
  func.func @transform_3(%arg0: i32) -> (i32, i32) {
    %c0_i32 = arith.constant 0 : i32
    %c0_i32_0 = arith.constant 0 : i32
    %c0_i32_1 = arith.constant 0 : i32
    return %c0_i32, %c0_i32_0 : i32, i32
  }
  func.func @transform_4(%arg0: i32) -> (i32, i32) {
    %c0_i32 = arith.constant 0 : i32
    %c0_i32_0 = arith.constant 0 : i32
    %c0_i32_1 = arith.constant 0 : i32
    return %c0_i32, %c0_i32_0 : i32, i32
  }
  func.func @transform_5(%arg0: i32) -> (i32, i32) {
    %c0_i32 = arith.constant 0 : i32
    %c0_i32_0 = arith.constant 0 : i32
    %c0_i32_1 = arith.constant 0 : i32
    return %c0_i32, %c0_i32_0 : i32, i32
  }
  func.func @transform_6(%arg0: i32) -> (i32, i32) {
    %c0_i32 = arith.constant 0 : i32
    %c0_i32_0 = arith.constant 0 : i32
    %c0_i32_1 = arith.constant 0 : i32
    return %c0_i32, %c0_i32_0 : i32, i32
  }
  func.func @transform_7(%arg0: i32) -> (i32, i32) {
    %c0_i32 = arith.constant 0 : i32
    %c0_i32_0 = arith.constant 0 : i32
    return %arg0, %c0_i32 : i32, i32
  }
}

</mosaic_0001>

<llo_original>
// kernel: tpu_custom_call.1
$region0: #{tpu_custom_call.1}
  #allocation0 [shape = 'u32[]', space=smem, size = 0x4, offset = 0x4, fixed_abs, tag = 'smem constant byte address 0x4 - core index']
  #allocation1 [shape = 'u32[144,128]{1,0:T(1,128)}', space=vmem, size = 0x12000, scoped, tag = 'internal scratch']
  %s0 = inlined_call_operand.hbm [shape: bf16[16,128], index: 0, kind: input, shape index: {}]
  %s1 = inlined_call_operand.hbm [shape: bf16[128,128], index: 1, kind: input, shape index: {}]
  %s2 = inlined_call_operand.vmem [shape: f32[1,128], index: 2, kind: input, shape index: {}]
  %s3 = inlined_call_operand.hbm [shape: bf16[128,128], index: 3, kind: input, shape index: {}]
  %s4 = inlined_call_operand.vmem [shape: f32[1,128], index: 4, kind: input, shape index: {}]
  %s5 = inlined_call_operand.hbm [shape: bf16[128,128], index: 5, kind: input, shape index: {}]
  %s6 = inlined_call_operand.vmem [shape: f32[1,128], index: 6, kind: input, shape index: {}]
  %s7 = inlined_call_operand.hbm [shape: f32[16,128], index: 7, kind: output, shape index: {}]
  %s8 = sld [smem:[#allocation0]]
  $region54: #{tpu_custom_call.1} parent=0
    _
  %s10 = ssub.s32 1, %s8
  %s11 = scalar_select 0, %s10, %s8
  $region1: #{tpu_custom_call.1} parent=0
    #allocation2 [shape = 'u8[4096]{0}', space=vmem, size = 0x1000, scoped, tag = 'input window, operand 0, single buffered']
    #allocation3 [shape = 's32[1]{0}', space=sflag, size = 0x4, scoped, tag = 'scoped memory for tpu_custom_call.1']
    #allocation4 [shape = 's32[1]{0}', space=sflag, size = 0x4, scoped, tag = 'scoped memory for tpu_custom_call.1']
    #allocation5 [shape = 'u8[32768]{0}', space=vmem, size = 0x8000, scoped, tag = 'input window, operand 1, single buffered']
    #allocation6 [shape = 's32[1]{0}', space=sflag, size = 0x4, scoped, tag = 'scoped memory for tpu_custom_call.1']
    #allocation7 [shape = 'u8[32768]{0}', space=vmem, size = 0x8000, scoped, tag = 'input window, operand 3, single buffered']
    #allocation8 [shape = 'u8[32768]{0}', space=vmem, size = 0x8000, scoped, tag = 'input window, operand 5, single buffered']
    #allocation9 [shape = 's32[1]{0}', space=sflag, size = 0x4, scoped, tag = 'scoped memory for tpu_custom_call.1']
    #allocation10 [shape = 'u8[8192]{0}', space=vmem, size = 0x2000, scoped, tag = 'output window, operand 0, single buffered']
    %12 = vsyncpa [#allocation3], 0
    %13 = vsyncpa [#allocation6], 0
    %14 = vsyncpa [#allocation9], 0
    %15 = vsyncpa [#allocation4], 0
    // Predicated region
    $region2: #{tpu_custom_call.1} parent=1 // pred_check
      _
    $region3: #{tpu_custom_call.1} parent=1 // pred_check_branch
      %17 = sbr.rel (0) target = $region5
    $region4: #{tpu_custom_call.1} parent=1 // pred_region
      %s19 = ssub.s32 128, 128
      %20 = vsyncadd [#allocation3], %s19
      %s21 = sshll.u32 [#allocation2], 4
      %s22 = int_to_ptr.vmem [resolvable:$true] %s21
      %27 = dma.hbm_to_vmem [thread:$0]  %s0, 128, %s22, [#allocation3], 64, 64, 4
    $region5: #{tpu_custom_call.1} parent=1 // pred_fallthru
      _
    // Predicated region
    $region6: #{tpu_custom_call.1} parent=1 // pred_check
      _
    $region7: #{tpu_custom_call.1} parent=1 // pred_check_branch
      %29 = sbr.rel (0) target = $region9
    $region8: #{tpu_custom_call.1} parent=1 // pred_region
      %s31 = ssub.s32 1024, 1024
      %32 = vsyncadd [#allocation6], %s31
      %s33 = sshll.u32 [#allocation5], 4
      %s34 = int_to_ptr.vmem [resolvable:$true] %s33
      %39 = dma.hbm_to_vmem [thread:$0]  %s1, 1024, %s34, [#allocation6], 64, 64, 4
    $region9: #{tpu_custom_call.1} parent=1 // pred_fallthru
      _
    // Predicated region
    $region10: #{tpu_custom_call.1} parent=1 // pred_check
      _
    $region11: #{tpu_custom_call.1} parent=1 // pred_check_branch
      %41 = sbr.rel (0) target = $region13
    $region12: #{tpu_custom_call.1} parent=1 // pred_region
      _
    $region13: #{tpu_custom_call.1} parent=1 // pred_fallthru
      _
    // Predicated region
    $region14: #{tpu_custom_call.1} parent=1 // pred_check
      _
    $region15: #{tpu_custom_call.1} parent=1 // pred_check_branch
      %43 = sbr.rel (0) target = $region17
    $region16: #{tpu_custom_call.1} parent=1 // pred_region
      %s45 = ssub.s32 1024, 1024
      %46 = vsyncadd [#allocation6], %s45
      %s47 = sshll.u32 [#allocation7], 4
      %s48 = int_to_ptr.vmem [resolvable:$true] %s47
      %53 = dma.hbm_to_vmem [thread:$0]  %s3, 1024, %s48, [#allocation6], 64, 64, 4
    $region17: #{tpu_custom_call.1} parent=1 // pred_fallthru
      _
    // Predicated region
    $region18: #{tpu_custom_call.1} parent=1 // pred_check
      _
    $region19: #{tpu_custom_call.1} parent=1 // pred_check_branch
      %55 = sbr.rel (0) target = $region21
    $region20: #{tpu_custom_call.1} parent=1 // pred_region
      _
    $region21: #{tpu_custom_call.1} parent=1 // pred_fallthru
      _
    // Predicated region
    $region22: #{tpu_custom_call.1} parent=1 // pred_check
      _
    $region23: #{tpu_custom_call.1} parent=1 // pred_check_branch
      %57 = sbr.rel (0) target = $region25
    $region24: #{tpu_custom_call.1} parent=1 // pred_region
      %s59 = ssub.s32 1024, 1024
      %60 = vsyncadd [#allocation9], %s59
      %s61 = sshll.u32 [#allocation8], 4
      %s62 = int_to_ptr.vmem [resolvable:$true] %s61
      %67 = dma.hbm_to_vmem [thread:$0]  %s5, 1024, %s62, [#allocation9], 64, 64, 4
    $region25: #{tpu_custom_call.1} parent=1 // pred_fallthru
      _
    // Predicated region
    $region26: #{tpu_custom_call.1} parent=1 // pred_check
      _
    $region27: #{tpu_custom_call.1} parent=1 // pred_check_branch
      %69 = sbr.rel (0) target = $region29
    $region28: #{tpu_custom_call.1} parent=1 // pred_region
      _
    $region29: #{tpu_custom_call.1} parent=1 // pred_fallthru
      _
    // Predicated region
    $region30: #{tpu_custom_call.1} parent=1 // pred_check
      _
    $region31: #{tpu_custom_call.1} parent=1 // pred_check_branch
      %71 = sbr.rel (0) target = $region33
    $region32: #{tpu_custom_call.1} parent=1 // pred_region
      %72 = dma.done [#allocation3], 128
    $region33: #{tpu_custom_call.1} parent=1 // pred_fallthru
      _
    // Predicated region
    $region34: #{tpu_custom_call.1} parent=1 // pred_check
      _
    $region35: #{tpu_custom_call.1} parent=1 // pred_check_branch
      %74 = sbr.rel (0) target = $region37
    $region36: #{tpu_custom_call.1} parent=1 // pred_region
      %75 = dma.done [#allocation6], 1024
    $region37: #{tpu_custom_call.1} parent=1 // pred_fallthru
      _
    // Predicated region
    $region38: #{tpu_custom_call.1} parent=1 // pred_check
      _
    $region39: #{tpu_custom_call.1} parent=1 // pred_check_branch
      %77 = sbr.rel (0) target = $region41
    $region40: #{tpu_custom_call.1} parent=1 // pred_region
      %78 = dma.done [#allocation6], 1024
    $region41: #{tpu_custom_call.1} parent=1 // pred_fallthru
      _
    // Predicated region
    $region42: #{tpu_custom_call.1} parent=1 // pred_check
      _
    $region43: #{tpu_custom_call.1} parent=1 // pred_check_branch
      %80 = sbr.rel (0) target = $region45
    $region44: #{tpu_custom_call.1} parent=1 // pred_region
      %81 = dma.done [#allocation9], 1024
    $region45: #{tpu_custom_call.1} parent=1 // pred_fallthru
      _
    %v83 = vld [vmem:[#allocation2] sm:$0xf]
    %v84 = vld [vmem:[#allocation2 + $0x4] sm:$0xf]
    %v85 = vld [vmem:[#allocation5] sm:$0xf]
    %v86 = vld [vmem:[#allocation5 + $0x4] sm:$0xf]
    %v87 = vld [vmem:[#allocation5 + $0x8] sm:$0xf]
    %v88 = vld [vmem:[#allocation5 + $0xc] sm:$0xf]
    %v89 = vld [vmem:[#allocation5 + $0x10] sm:$0xf]
    %v90 = vld [vmem:[#allocation5 + $0x14] sm:$0xf]
    %v91 = vld [vmem:[#allocation5 + $0x18] sm:$0xf]
    %v92 = vld [vmem:[#allocation5 + $0x1c] sm:$0xf]
    %v93 = vld [vmem:[#allocation5 + $0x20] sm:$0xf]
    %v94 = vld [vmem:[#allocation5 + $0x24] sm:$0xf]
    %v95 = vld [vmem:[#allocation5 + $0x28] sm:$0xf]
    %v96 = vld [vmem:[#allocation5 + $0x2c] sm:$0xf]
    %v97 = vld [vmem:[#allocation5 + $0x30] sm:$0xf]
    %v98 = vld [vmem:[#allocation5 + $0x34] sm:$0xf]
    %v99 = vld [vmem:[#allocation5 + $0x38] sm:$0xf]
    %v100 = vld [vmem:[#allocation5 + $0x3c] sm:$0xf]
    %v101 = vld [vmem:[%s2] sm:$0x1]
    %v103 = vlaneseq
    %v104 = vshrl.u32 %v103, 7
    %v105 = vsub.s32 0, %v104
    %v106 = vrot.slane %v101, %v105
    %v110 = vunpack.c.l.b16 %v83
    %v111 = vunpack.c.l.b16 %v84
    %v112 = vpack.c.b16 %v111, %v110
    %v130 = vunpack.c.l.b16 %v85
    %v131 = vunpack.c.l.b16 %v86
    %v132 = vunpack.c.l.b16 %v87
    %v133 = vunpack.c.l.b16 %v88
    %v134 = vunpack.c.l.b16 %v89
    %v135 = vunpack.c.l.b16 %v90
    %v136 = vunpack.c.l.b16 %v91
    %v137 = vunpack.c.l.b16 %v92
    %v138 = vunpack.c.l.b16 %v93
    %v139 = vunpack.c.l.b16 %v94
    %v140 = vunpack.c.l.b16 %v95
    %v141 = vunpack.c.l.b16 %v96
    %v142 = vunpack.c.l.b16 %v97
    %v143 = vunpack.c.l.b16 %v98
    %v144 = vunpack.c.l.b16 %v99
    %v145 = vunpack.c.l.b16 %v100
    %v146 = vpack.c.b16 %v131, %v130
    %v147 = vpack.c.b16 %v133, %v132
    %v148 = vpack.c.b16 %v135, %v134
    %v149 = vpack.c.b16 %v137, %v136
    %v150 = vpack.c.b16 %v139, %v138
    %v151 = vpack.c.b16 %v141, %v140
    %v152 = vpack.c.b16 %v143, %v142
    %v153 = vpack.c.b16 %v145, %v144
    %162 = vmatprep.subr.bf16.mxu0 0
    %163 = vmatpush1.bf16.msra.mxu0 %v146
    %164 = vmatprep.subr.bf16.mxu0 0
    %165 = vmatpush1.bf16.msra.mxu0 %v147
    %166 = vmatprep.subr.bf16.mxu0 0
    %167 = vmatpush1.bf16.msra.mxu0 %v148
    %168 = vmatprep.subr.bf16.mxu0 0
    %169 = vmatpush1.bf16.msra.mxu0 %v149
    %170 = vmatprep.subr.bf16.mxu0 0
    %171 = vmatpush1.bf16.msra.mxu0 %v150
    %172 = vmatprep.subr.bf16.mxu0 0
    %173 = vmatpush1.bf16.msra.mxu0 %v151
    %174 = vmatprep.subr.bf16.mxu0 0
    %175 = vmatpush1.bf16.msra.mxu0 %v152
    %176 = vmatprep.subr.bf16.mxu0 0
    %177 = vmatpush1.bf16.msra.mxu0 %v153
    %178 = vmatprep.subr.bf16.mxu0 0
    %179 = vmatpush1.bf16.msra.mxu0 0
    %180 = vmatprep.subr.bf16.mxu0 0
    %181 = vmatpush1.bf16.msra.mxu0 0
    %182 = vmatprep.subr.bf16.mxu0 0
    %183 = vmatpush1.bf16.msra.mxu0 0
    %184 = vmatprep.subr.bf16.mxu0 0
    %185 = vmatpush1.bf16.msra.mxu0 0
    %186 = vmatprep.subr.bf16.mxu0 0
    %187 = vmatpush1.bf16.msra.mxu0 0
    %188 = vmatprep.subr.bf16.mxu0 0
    %189 = vmatpush1.bf16.msra.mxu0 0
    %190 = vmatprep.subr.bf16.mxu0 0
    %191 = vmatpush1.bf16.msra.mxu0 0
    %192 = vmatprep.subr.bf16.mxu0 0
    %193 = vmatpush1.bf16.msra.mxu0 0
    %194 = vmatprep.mubr.bf16.mxu0 0
    %195 = vmatmul.mubr.bf16.gmra.mrb[0].mxu0 %v112
    %v196 = vpop.f32.mrb[0].mxu0
    %v197 = vadd.f32 %v106, %v196
    %v198 = vpop.f32.mrb[0].mxu0
    %v199 = vpop.f32.mrb[0].mxu0
    %v200 = vadd.f32 %v106, %v199
    %v201 = vpop.f32.mrb[0].mxu0
    %202 = vdwg.mxu0
    %v203 = vmul.f32 %v197, 0.01
    %v204 = vmul.f32 %v200, 0.01
    %v205 = vmax.f32 %v197, %v203
    %v206 = vmax.f32 %v200, %v204
    %v207 = vpack.c.bf16 %v206, %v205
    %v208 = vld [vmem:[#allocation7] sm:$0xf]
    %v209 = vld [vmem:[#allocation7 + $0x4] sm:$0xf]
    %v210 = vld [vmem:[#allocation7 + $0x8] sm:$0xf]
    %v211 = vld [vmem:[#allocation7 + $0xc] sm:$0xf]
    %v212 = vld [vmem:[#allocation7 + $0x10] sm:$0xf]
    %v213 = vld [vmem:[#allocation7 + $0x14] sm:$0xf]
    %v214 = vld [vmem:[#allocation7 + $0x18] sm:$0xf]
    %v215 = vld [vmem:[#allocation7 + $0x1c] sm:$0xf]
    %v216 = vld [vmem:[#allocation7 + $0x20] sm:$0xf]
    %v217 = vld [vmem:[#allocation7 + $0x24] sm:$0xf]
    %v218 = vld [vmem:[#allocation7 + $0x28] sm:$0xf]
    %v219 = vld [vmem:[#allocation7 + $0x2c] sm:$0xf]
    %v220 = vld [vmem:[#allocation7 + $0x30] sm:$0xf]
    %v221 = vld [vmem:[#allocation7 + $0x34] sm:$0xf]
    %v222 = vld [vmem:[#allocation7 + $0x38] sm:$0xf]
    %v223 = vld [vmem:[#allocation7 + $0x3c] sm:$0xf]
    %v224 = vld [vmem:[%s4] sm:$0x1]
    %v226 = vlaneseq
    %v227 = vshrl.u32 %v226, 7
    %v228 = vsub.s32 0, %v227
    %v229 = vrot.slane %v224, %v228
    %v247 = vunpack.c.l.b16 %v208
    %v248 = vunpack.c.l.b16 %v209
    %v249 = vunpack.c.l.b16 %v210
    %v250 = vunpack.c.l.b16 %v211
    %v251 = vunpack.c.l.b16 %v212
    %v252 = vunpack.c.l.b16 %v213
    %v253 = vunpack.c.l.b16 %v214
    %v254 = vunpack.c.l.b16 %v215
    %v255 = vunpack.c.l.b16 %v216
    %v256 = vunpack.c.l.b16 %v217
    %v257 = vunpack.c.l.b16 %v218
    %v258 = vunpack.c.l.b16 %v219
    %v259 = vunpack.c.l.b16 %v220
    %v260 = vunpack.c.l.b16 %v221
    %v261 = vunpack.c.l.b16 %v222
    %v262 = vunpack.c.l.b16 %v223
    %v263 = vpack.c.b16 %v248, %v247
    %v264 = vpack.c.b16 %v250, %v249
    %v265 = vpack.c.b16 %v252, %v251
    %v266 = vpack.c.b16 %v254, %v253
    %v267 = vpack.c.b16 %v256, %v255
    %v268 = vpack.c.b16 %v258, %v257
    %v269 = vpack.c.b16 %v260, %v259
    %v270 = vpack.c.b16 %v262, %v261
    %279 = vmatprep.subr.bf16.mxu0 0
    %280 = vmatpush1.bf16.msra.mxu0 %v263
    %281 = vmatprep.subr.bf16.mxu0 0
    %282 = vmatpush1.bf16.msra.mxu0 %v264
    %283 = vmatprep.subr.bf16.mxu0 0
    %284 = vmatpush1.bf16.msra.mxu0 %v265
    %285 = vmatprep.subr.bf16.mxu0 0
    %286 = vmatpush1.bf16.msra.mxu0 %v266
    %287 = vmatprep.subr.bf16.mxu0 0
    %288 = vmatpush1.bf16.msra.mxu0 %v267
    %289 = vmatprep.subr.bf16.mxu0 0
    %290 = vmatpush1.bf16.msra.mxu0 %v268
    %291 = vmatprep.subr.bf16.mxu0 0
    %292 = vmatpush1.bf16.msra.mxu0 %v269
    %293 = vmatprep.subr.bf16.mxu0 0
    %294 = vmatpush1.bf16.msra.mxu0 %v270
    %295 = vmatprep.subr.bf16.mxu0 0
    %296 = vmatpush1.bf16.msra.mxu0 0
    %297 = vmatprep.subr.bf16.mxu0 0
    %298 = vmatpush1.bf16.msra.mxu0 0
    %299 = vmatprep.subr.bf16.mxu0 0
    %300 = vmatpush1.bf16.msra.mxu0 0
    %301 = vmatprep.subr.bf16.mxu0 0
    %302 = vmatpush1.bf16.msra.mxu0 0
    %303 = vmatprep.subr.bf16.mxu0 0
    %304 = vmatpush1.bf16.msra.mxu0 0
    %305 = vmatprep.subr.bf16.mxu0 0
    %306 = vmatpush1.bf16.msra.mxu0 0
    %307 = vmatprep.subr.bf16.mxu0 0
    %308 = vmatpush1.bf16.msra.mxu0 0
    %309 = vmatprep.subr.bf16.mxu0 0
    %310 = vmatpush1.bf16.msra.mxu0 0
    %311 = vmatprep.mubr.bf16.mxu0 0
    %312 = vmatmul.mubr.bf16.gmra.mrb[0].mxu0 %v207
    %v313 = vpop.f32.mrb[0].mxu0
    %v314 = vadd.f32 %v229, %v313
    %v315 = vpop.f32.mrb[0].mxu0
    %v316 = vpop.f32.mrb[0].mxu0
    %v317 = vadd.f32 %v229, %v316
    %v318 = vpop.f32.mrb[0].mxu0
    %319 = vdwg.mxu0
    %v320 = vmul.f32 %v314, 0.01
    %v321 = vmul.f32 %v317, 0.01
    %v322 = vmax.f32 %v314, %v320
    %v323 = vmax.f32 %v317, %v321
    %v324 = vpack.c.bf16 %v323, %v322
    %v325 = vld [vmem:[#allocation8] sm:$0xf]
    %v326 = vld [vmem:[#allocation8 + $0x4] sm:$0xf]
    %v327 = vld [vmem:[#allocation8 + $0x8] sm:$0xf]
    %v328 = vld [vmem:[#allocation8 + $0xc] sm:$0xf]
    %v329 = vld [vmem:[#allocation8 + $0x10] sm:$0xf]
    %v330 = vld [vmem:[#allocation8 + $0x14] sm:$0xf]
    %v331 = vld [vmem:[#allocation8 + $0x18] sm:$0xf]
    %v332 = vld [vmem:[#allocation8 + $0x1c] sm:$0xf]
    %v333 = vld [vmem:[#allocation8 + $0x20] sm:$0xf]
    %v334 = vld [vmem:[#allocation8 + $0x24] sm:$0xf]
    %v335 = vld [vmem:[#allocation8 + $0x28] sm:$0xf]
    %v336 = vld [vmem:[#allocation8 + $0x2c] sm:$0xf]
    %v337 = vld [vmem:[#allocation8 + $0x30] sm:$0xf]
    %v338 = vld [vmem:[#allocation8 + $0x34] sm:$0xf]
    %v339 = vld [vmem:[#allocation8 + $0x38] sm:$0xf]
    %v340 = vld [vmem:[#allocation8 + $0x3c] sm:$0xf]
    %v341 = vld [vmem:[%s6] sm:$0x1]
    %v343 = vlaneseq
    %v344 = vshrl.u32 %v343, 7
    %v345 = vsub.s32 0, %v344
    %v346 = vrot.slane %v341, %v345
    %v364 = vunpack.c.l.b16 %v325
    %v365 = vunpack.c.l.b16 %v326
    %v366 = vunpack.c.l.b16 %v327
    %v367 = vunpack.c.l.b16 %v328
    %v368 = vunpack.c.l.b16 %v329
    %v369 = vunpack.c.l.b16 %v330
    %v370 = vunpack.c.l.b16 %v331
    %v371 = vunpack.c.l.b16 %v332
    %v372 = vunpack.c.l.b16 %v333
    %v373 = vunpack.c.l.b16 %v334
    %v374 = vunpack.c.l.b16 %v335
    %v375 = vunpack.c.l.b16 %v336
    %v376 = vunpack.c.l.b16 %v337
    %v377 = vunpack.c.l.b16 %v338
    %v378 = vunpack.c.l.b16 %v339
    %v379 = vunpack.c.l.b16 %v340
    %v380 = vpack.c.b16 %v365, %v364
    %v381 = vpack.c.b16 %v367, %v366
    %v382 = vpack.c.b16 %v369, %v368
    %v383 = vpack.c.b16 %v371, %v370
    %v384 = vpack.c.b16 %v373, %v372
    %v385 = vpack.c.b16 %v375, %v374
    %v386 = vpack.c.b16 %v377, %v376
    %v387 = vpack.c.b16 %v379, %v378
    %396 = vmatprep.subr.bf16.mxu0 0
    %397 = vmatpush1.bf16.msra.mxu0 %v380
    %398 = vmatprep.subr.bf16.mxu0 0
    %399 = vmatpush1.bf16.msra.mxu0 %v381
    %400 = vmatprep.subr.bf16.mxu0 0
    %401 = vmatpush1.bf16.msra.mxu0 %v382
    %402 = vmatprep.subr.bf16.mxu0 0
    %403 = vmatpush1.bf16.msra.mxu0 %v383
    %404 = vmatprep.subr.bf16.mxu0 0
    %405 = vmatpush1.bf16.msra.mxu0 %v384
    %406 = vmatprep.subr.bf16.mxu0 0
    %407 = vmatpush1.bf16.msra.mxu0 %v385
    %408 = vmatprep.subr.bf16.mxu0 0
    %409 = vmatpush1.bf16.msra.mxu0 %v386
    %410 = vmatprep.subr.bf16.mxu0 0
    %411 = vmatpush1.bf16.msra.mxu0 %v387
    %412 = vmatprep.subr.bf16.mxu0 0
    %413 = vmatpush1.bf16.msra.mxu0 0
    %414 = vmatprep.subr.bf16.mxu0 0
    %415 = vmatpush1.bf16.msra.mxu0 0
    %416 = vmatprep.subr.bf16.mxu0 0
    %417 = vmatpush1.bf16.msra.mxu0 0
    %418 = vmatprep.subr.bf16.mxu0 0
    %419 = vmatpush1.bf16.msra.mxu0 0
    %420 = vmatprep.subr.bf16.mxu0 0
    %421 = vmatpush1.bf16.msra.mxu0 0
    %422 = vmatprep.subr.bf16.mxu0 0
    %423 = vmatpush1.bf16.msra.mxu0 0
    %424 = vmatprep.subr.bf16.mxu0 0
    %425 = vmatpush1.bf16.msra.mxu0 0
    %426 = vmatprep.subr.bf16.mxu0 0
    %427 = vmatpush1.bf16.msra.mxu0 0
    %428 = vmatprep.mubr.bf16.mxu0 0
    %429 = vmatmul.mubr.bf16.gmra.mrb[0].mxu0 %v324
    %v430 = vpop.f32.mrb[0].mxu0
    %v431 = vadd.f32 %v346, %v430
    %v432 = vpop.f32.mrb[0].mxu0
    %v433 = vpop.f32.mrb[0].mxu0
    %v434 = vadd.f32 %v346, %v433
    %v435 = vpop.f32.mrb[0].mxu0
    %436 = vdwg.mxu0
    %437 = vst [vmem:[#allocation10] sm:$0xff] %v431
    %438 = vst [vmem:[#allocation10 + $0x8] sm:$0xff] %v434
    // Predicated region
    $region46: #{tpu_custom_call.1} parent=1 // pred_check
      _
    $region47: #{tpu_custom_call.1} parent=1 // pred_check_branch
      %440 = sbr.rel (0) target = $region49
    $region48: #{tpu_custom_call.1} parent=1 // pred_region
      %s442 = ssub.s32 256, 256
      %443 = vsyncadd [#allocation4], %s442
      %s444 = sshll.u32 [#allocation10], 4
      %s445 = int_to_ptr.vmem [resolvable:$true] %s444
      %450 = dma.vmem_to_hbm [thread:$0]  %s445, 256, %s7, [#allocation4], 128, 128, 8
    $region49: #{tpu_custom_call.1} parent=1 // pred_fallthru
      _
    // Predicated region
    $region50: #{tpu_custom_call.1} parent=1 // pred_check
      _
    $region51: #{tpu_custom_call.1} parent=1 // pred_check_branch
      %452 = sbr.rel (0) target = $region53
    $region52: #{tpu_custom_call.1} parent=1 // pred_region
      %453 = dma.done [#allocation4], 256
    $region53: #{tpu_custom_call.1} parent=1 // pred_fallthru
      _
    %454 = vsyncpa [#allocation3], 1
    %455 = vsyncpa [#allocation6], 1
    %456 = vsyncpa [#allocation9], 1
    %457 = vsyncpa [#allocation4], 1

// kernel: tpu_custom_call.1
$region0: #{tpu_custom_call.1}
  #allocation0 [shape = 'u32[]', space=smem, size = 0x4, offset = 0x4, fixed_abs, tag = 'smem constant byte address 0x4 - core index']
  #allocation1 [shape = 'u32[144,128]{1,0:T(1,128)}', space=vmem, size = 0x12000, scoped, tag = 'internal scratch']
  %s0 = inlined_call_operand.hbm [shape: bf16[16,128], index: 0, kind: input, shape index: {}]
  %s1 = inlined_call_operand.hbm [shape: bf16[128,128], index: 1, kind: input, shape index: {}]
  %s2 = inlined_call_operand.vmem [shape: f32[1,128], index: 2, kind: input, shape index: {}]
  %s3 = inlined_call_operand.hbm [shape: bf16[128,128], index: 3, kind: input, shape index: {}]
  %s4 = inlined_call_operand.vmem [shape: f32[1,128], index: 4, kind: input, shape index: {}]
  %s5 = inlined_call_operand.hbm [shape: bf16[128,128], index: 5, kind: input, shape index: {}]
  %s6 = inlined_call_operand.vmem [shape: f32[1,128], index: 6, kind: input, shape index: {}]
  %s7 = inlined_call_operand.hbm [shape: f32[16,128], index: 7, kind: output, shape index: {}]
  %s8 = sld [smem:[#allocation0]]
  $region54: #{tpu_custom_call.1} parent=0
    _
  %s10 = ssub.s32 1, %s8
  %s11 = scalar_select 0, %s10, %s8
  $region1: #{tpu_custom_call.1} parent=0
    #allocation2 [shape = 'u8[4096]{0}', space=vmem, size = 0x1000, scoped, tag = 'input window, operand 0, single buffered']
    #allocation3 [shape = 's32[1]{0}', space=sflag, size = 0x4, scoped, tag = 'scoped memory for tpu_custom_call.1']
    #allocation4 [shape = 's32[1]{0}', space=sflag, size = 0x4, scoped, tag = 'scoped memory for tpu_custom_call.1']
    #allocation5 [shape = 'u8[32768]{0}', space=vmem, size = 0x8000, scoped, tag = 'input window, operand 1, single buffered']
    #allocation6 [shape = 's32[1]{0}', space=sflag, size = 0x4, scoped, tag = 'scoped memory for tpu_custom_call.1']
    #allocation7 [shape = 'u8[32768]{0}', space=vmem, size = 0x8000, scoped, tag = 'input window, operand 3, single buffered']
    #allocation8 [shape = 'u8[32768]{0}', space=vmem, size = 0x8000, scoped, tag = 'input window, operand 5, single buffered']
    #allocation9 [shape = 's32[1]{0}', space=sflag, size = 0x4, scoped, tag = 'scoped memory for tpu_custom_call.1']
    #allocation10 [shape = 'u8[8192]{0}', space=vmem, size = 0x2000, scoped, tag = 'output window, operand 0, single buffered']
    %12 = vsyncpa [#allocation3], 0
    %13 = vsyncpa [#allocation6], 0
    %14 = vsyncpa [#allocation9], 0
    %15 = vsyncpa [#allocation4], 0
    // Predicated region
    $region2: #{tpu_custom_call.1} parent=1 // pred_check
      _
    $region3: #{tpu_custom_call.1} parent=1 // pred_check_branch
      %17 = sbr.rel (0) target = $region5
    $region4: #{tpu_custom_call.1} parent=1 // pred_region
      %s19 = ssub.s32 128, 128
      %20 = vsyncadd [#allocation3], %s19
      %s21 = sshll.u32 [#allocation2], 4
      %s22 = int_to_ptr.vmem [resolvable:$true] %s21
      %27 = dma.hbm_to_vmem [thread:$0]  %s0, 128, %s22, [#allocation3], 64, 64, 4
    $region5: #{tpu_custom_call.1} parent=1 // pred_fallthru
      _
    // Predicated region
    $region6: #{tpu_custom_call.1} parent=1 // pred_check
      _
    $region7: #{tpu_custom_call.1} parent=1 // pred_check_branch
      %29 = sbr.rel (0) target = $region9
    $region8: #{tpu_custom_call.1} parent=1 // pred_region
      %s31 = ssub.s32 1024, 1024
      %32 = vsyncadd [#allocation6], %s31
      %s33 = sshll.u32 [#allocation5], 4
      %s34 = int_to_ptr.vmem [resolvable:$true] %s33
      %39 = dma.hbm_to_vmem [thread:$0]  %s1, 1024, %s34, [#allocation6], 64, 64, 4
    $region9: #{tpu_custom_call.1} parent=1 // pred_fallthru
      _
    // Predicated region
    $region10: #{tpu_custom_call.1} parent=1 // pred_check
      _
    $region11: #{tpu_custom_call.1} parent=1 // pred_check_branch
      %41 = sbr.rel (0) target = $region13
    $region12: #{tpu_custom_call.1} parent=1 // pred_region
      _
    $region13: #{tpu_custom_call.1} parent=1 // pred_fallthru
      _
    // Predicated region
    $region14: #{tpu_custom_call.1} parent=1 // pred_check
      _
    $region15: #{tpu_custom_call.1} parent=1 // pred_check_branch
      %43 = sbr.rel (0) target = $region17
    $region16: #{tpu_custom_call.1} parent=1 // pred_region
      %s45 = ssub.s32 1024, 1024
      %46 = vsyncadd [#allocation6], %s45
      %s47 = sshll.u32 [#allocation7], 4
      %s48 = int_to_ptr.vmem [resolvable:$true] %s47
      %53 = dma.hbm_to_vmem [thread:$0]  %s3, 1024, %s48, [#allocation6], 64, 64, 4
    $region17: #{tpu_custom_call.1} parent=1 // pred_fallthru
      _
    // Predicated region
    $region18: #{tpu_custom_call.1} parent=1 // pred_check
      _
    $region19: #{tpu_custom_call.1} parent=1 // pred_check_branch
      %55 = sbr.rel (0) target = $region21
    $region20: #{tpu_custom_call.1} parent=1 // pred_region
      _
    $region21: #{tpu_custom_call.1} parent=1 // pred_fallthru
      _
    // Predicated region
    $region22: #{tpu_custom_call.1} parent=1 // pred_check
      _
    $region23: #{tpu_custom_call.1} parent=1 // pred_check_branch
      %57 = sbr.rel (0) target = $region25
    $region24: #{tpu_custom_call.1} parent=1 // pred_region
      %s59 = ssub.s32 1024, 1024
      %60 = vsyncadd [#allocation9], %s59
      %s61 = sshll.u32 [#allocation8], 4
      %s62 = int_to_ptr.vmem [resolvable:$true] %s61
      %67 = dma.hbm_to_vmem [thread:$0]  %s5, 1024, %s62, [#allocation9], 64, 64, 4
    $region25: #{tpu_custom_call.1} parent=1 // pred_fallthru
      _
    // Predicated region
    $region26: #{tpu_custom_call.1} parent=1 // pred_check
      _
    $region27: #{tpu_custom_call.1} parent=1 // pred_check_branch
      %69 = sbr.rel (0) target = $region29
    $region28: #{tpu_custom_call.1} parent=1 // pred_region
      _
    $region29: #{tpu_custom_call.1} parent=1 // pred_fallthru
      _
    // Predicated region
    $region30: #{tpu_custom_call.1} parent=1 // pred_check
      _
    $region31: #{tpu_custom_call.1} parent=1 // pred_check_branch
      %71 = sbr.rel (0) target = $region33
    $region32: #{tpu_custom_call.1} parent=1 // pred_region
      %72 = dma.done [#allocation3], 128
    $region33: #{tpu_custom_call.1} parent=1 // pred_fallthru
      _
    // Predicated region
    $region34: #{tpu_custom_call.1} parent=1 // pred_check
      _
    $region35: #{tpu_custom_call.1} parent=1 // pred_check_branch
      %74 = sbr.rel (0) target = $region37
    $region36: #{tpu_custom_call.1} parent=1 // pred_region
      %75 = dma.done [#allocation6], 1024
    $region37: #{tpu_custom_call.1} parent=1 // pred_fallthru
      _
    // Predicated region
    $region38: #{tpu_custom_call.1} parent=1 // pred_check
      _
    $region39: #{tpu_custom_call.1} parent=1 // pred_check_branch
      %77 = sbr.rel (0) target = $region41
    $region40: #{tpu_custom_call.1} parent=1 // pred_region
      %78 = dma.done [#allocation6], 1024
    $region41: #{tpu_custom_call.1} parent=1 // pred_fallthru
      _
    // Predicated region
    $region42: #{tpu_custom_call.1} parent=1 // pred_check
      _
    $region43: #{tpu_custom_call.1} parent=1 // pred_check_branch
      %80 = sbr.rel (0) target = $region45
    $region44: #{tpu_custom_call.1} parent=1 // pred_region
      %81 = dma.done [#allocation9], 1024
    $region45: #{tpu_custom_call.1} parent=1 // pred_fallthru
      _
    %v83 = vld [vmem:[#allocation2] sm:$0xf]
    %v84 = vld [vmem:[#allocation2 + $0x4] sm:$0xf]
    %v85 = vld [vmem:[#allocation5] sm:$0xf]
    %v86 = vld [vmem:[#allocation5 + $0x4] sm:$0xf]
    %v87 = vld [vmem:[#allocation5 + $0x8] sm:$0xf]
    %v88 = vld [vmem:[#allocation5 + $0xc] sm:$0xf]
    %v89 = vld [vmem:[#allocation5 + $0x10] sm:$0xf]
    %v90 = vld [vmem:[#allocation5 + $0x14] sm:$0xf]
    %v91 = vld [vmem:[#allocation5 + $0x18] sm:$0xf]
    %v92 = vld [vmem:[#allocation5 + $0x1c] sm:$0xf]
    %v93 = vld [vmem:[#allocation5 + $0x20] sm:$0xf]
    %v94 = vld [vmem:[#allocation5 + $0x24] sm:$0xf]
    %v95 = vld [vmem:[#allocation5 + $0x28] sm:$0xf]
    %v96 = vld [vmem:[#allocation5 + $0x2c] sm:$0xf]
    %v97 = vld [vmem:[#allocation5 + $0x30] sm:$0xf]
    %v98 = vld [vmem:[#allocation5 + $0x34] sm:$0xf]
    %v99 = vld [vmem:[#allocation5 + $0x38] sm:$0xf]
    %v100 = vld [vmem:[#allocation5 + $0x3c] sm:$0xf]
    %v101 = vld [vmem:[%s2] sm:$0x1]
    %v103 = vlaneseq
    %v104 = vshrl.u32 %v103, 7
    %v105 = vsub.s32 0, %v104
    %v106 = vrot.slane %v101, %v105
    %v110 = vunpack.c.l.b16 %v83
    %v111 = vunpack.c.l.b16 %v84
    %v112 = vpack.c.b16 %v111, %v110
    %v130 = vunpack.c.l.b16 %v85
    %v131 = vunpack.c.l.b16 %v86
    %v132 = vunpack.c.l.b16 %v87
    %v133 = vunpack.c.l.b16 %v88
    %v134 = vunpack.c.l.b16 %v89
    %v135 = vunpack.c.l.b16 %v90
    %v136 = vunpack.c.l.b16 %v91
    %v137 = vunpack.c.l.b16 %v92
    %v138 = vunpack.c.l.b16 %v93
    %v139 = vunpack.c.l.b16 %v94
    %v140 = vunpack.c.l.b16 %v95
    %v141 = vunpack.c.l.b16 %v96
    %v142 = vunpack.c.l.b16 %v97
    %v143 = vunpack.c.l.b16 %v98
    %v144 = vunpack.c.l.b16 %v99
    %v145 = vunpack.c.l.b16 %v100
    %v146 = vpack.c.b16 %v131, %v130
    %v147 = vpack.c.b16 %v133, %v132
    %v148 = vpack.c.b16 %v135, %v134
    %v149 = vpack.c.b16 %v137, %v136
    %v150 = vpack.c.b16 %v139, %v138
    %v151 = vpack.c.b16 %v141, %v140
    %v152 = vpack.c.b16 %v143, %v142
    %v153 = vpack.c.b16 %v145, %v144
    %162 = vmatprep.subr.bf16.mxu0 0
    %163 = vmatpush1.bf16.msra.mxu0 %v146
    %164 = vmatprep.subr.bf16.mxu0 0
    %165 = vmatpush1.bf16.msra.mxu0 %v147
    %166 = vmatprep.subr.bf16.mxu0 0
    %167 = vmatpush1.bf16.msra.mxu0 %v148
    %168 = vmatprep.subr.bf16.mxu0 0
    %169 = vmatpush1.bf16.msra.mxu0 %v149
    %170 = vmatprep.subr.bf16.mxu0 0
    %171 = vmatpush1.bf16.msra.mxu0 %v150
    %172 = vmatprep.subr.bf16.mxu0 0
    %173 = vmatpush1.bf16.msra.mxu0 %v151
    %174 = vmatprep.subr.bf16.mxu0 0
    %175 = vmatpush1.bf16.msra.mxu0 %v152
    %176 = vmatprep.subr.bf16.mxu0 0
    %177 = vmatpush1.bf16.msra.mxu0 %v153
    %178 = vmatprep.subr.bf16.mxu0 0
    %179 = vmatpush1.bf16.msra.mxu0 0
    %180 = vmatprep.subr.bf16.mxu0 0
    %181 = vmatpush1.bf16.msra.mxu0 0
    %182 = vmatprep.subr.bf16.mxu0 0
    %183 = vmatpush1.bf16.msra.mxu0 0
    %184 = vmatprep.subr.bf16.mxu0 0
    %185 = vmatpush1.bf16.msra.mxu0 0
    %186 = vmatprep.subr.bf16.mxu0 0
    %187 = vmatpush1.bf16.msra.mxu0 0
    %188 = vmatprep.subr.bf16.mxu0 0
    %189 = vmatpush1.bf16.msra.mxu0 0
    %190 = vmatprep.subr.bf16.mxu0 0
    %191 = vmatpush1.bf16.msra.mxu0 0
    %192 = vmatprep.subr.bf16.mxu0 0
    %193 = vmatpush1.bf16.msra.mxu0 0
    %194 = vmatprep.mubr.bf16.mxu0 0
    %195 = vmatmul.mubr.bf16.gmra.mrb[0].mxu0 %v112
    %v196 = vpop.f32.mrb[0].mxu0
    %v197 = vadd.f32 %v106, %v196
    %v198 = vpop.f32.mrb[0].mxu0
    %v199 = vpop.f32.mrb[0].mxu0
    %v200 = vadd.f32 %v106, %v199
    %v201 = vpop.f32.mrb[0].mxu0
    %202 = vdwg.mxu0
    %v203 = vmul.f32 %v197, 0.01
    %v204 = vmul.f32 %v200, 0.01
    %v205 = vmax.f32 %v197, %v203
    %v206 = vmax.f32 %v200, %v204
    %v207 = vpack.c.bf16 %v206, %v205
    %v208 = vld [vmem:[#allocation7] sm:$0xf]
    %v209 = vld [vmem:[#allocation7 + $0x4] sm:$0xf]
    %v210 = vld [vmem:[#allocation7 + $0x8] sm:$0xf]
    %v211 = vld [vmem:[#allocation7 + $0xc] sm:$0xf]
    %v212 = vld [vmem:[#allocation7 + $0x10] sm:$0xf]
    %v213 = vld [vmem:[#allocation7 + $0x14] sm:$0xf]
    %v214 = vld [vmem:[#allocation7 + $0x18] sm:$0xf]
    %v215 = vld [vmem:[#allocation7 + $0x1c] sm:$0xf]
    %v216 = vld [vmem:[#allocation7 + $0x20] sm:$0xf]
    %v217 = vld [vmem:[#allocation7 + $0x24] sm:$0xf]
    %v218 = vld [vmem:[#allocation7 + $0x28] sm:$0xf]
    %v219 = vld [vmem:[#allocation7 + $0x2c] sm:$0xf]
    %v220 = vld [vmem:[#allocation7 + $0x30] sm:$0xf]
    %v221 = vld [vmem:[#allocation7 + $0x34] sm:$0xf]
    %v222 = vld [vmem:[#allocation7 + $0x38] sm:$0xf]
    %v223 = vld [vmem:[#allocation7 + $0x3c] sm:$0xf]
    %v224 = vld [vmem:[%s4] sm:$0x1]
    %v226 = vlaneseq
    %v227 = vshrl.u32 %v226, 7
    %v228 = vsub.s32 0, %v227
    %v229 = vrot.slane %v224, %v228
    %v247 = vunpack.c.l.b16 %v208
    %v248 = vunpack.c.l.b16 %v209
    %v249 = vunpack.c.l.b16 %v210
    %v250 = vunpack.c.l.b16 %v211
    %v251 = vunpack.c.l.b16 %v212
    %v252 = vunpack.c.l.b16 %v213
    %v253 = vunpack.c.l.b16 %v214
    %v254 = vunpack.c.l.b16 %v215
    %v255 = vunpack.c.l.b16 %v216
    %v256 = vunpack.c.l.b16 %v217
    %v257 = vunpack.c.l.b16 %v218
    %v258 = vunpack.c.l.b16 %v219
    %v259 = vunpack.c.l.b16 %v220
    %v260 = vunpack.c.l.b16 %v221
    %v261 = vunpack.c.l.b16 %v222
    %v262 = vunpack.c.l.b16 %v223
    %v263 = vpack.c.b16 %v248, %v247
    %v264 = vpack.c.b16 %v250, %v249
    %v265 = vpack.c.b16 %v252, %v251
    %v266 = vpack.c.b16 %v254, %v253
    %v267 = vpack.c.b16 %v256, %v255
    %v268 = vpack.c.b16 %v258, %v257
    %v269 = vpack.c.b16 %v260, %v259
    %v270 = vpack.c.b16 %v262, %v261
    %279 = vmatprep.subr.bf16.mxu0 0
    %280 = vmatpush1.bf16.msra.mxu0 %v263
    %281 = vmatprep.subr.bf16.mxu0 0
    %282 = vmatpush1.bf16.msra.mxu0 %v264
    %283 = vmatprep.subr.bf16.mxu0 0
    %284 = vmatpush1.bf16.msra.mxu0 %v265
    %285 = vmatprep.subr.bf16.mxu0 0
    %286 = vmatpush1.bf16.msra.mxu0 %v266
    %287 = vmatprep.subr.bf16.mxu0 0
    %288 = vmatpush1.bf16.msra.mxu0 %v267
    %289 = vmatprep.subr.bf16.mxu0 0
    %290 = vmatpush1.bf16.msra.mxu0 %v268
    %291 = vmatprep.subr.bf16.mxu0 0
    %292 = vmatpush1.bf16.msra.mxu0 %v269
    %293 = vmatprep.subr.bf16.mxu0 0
    %294 = vmatpush1.bf16.msra.mxu0 %v270
    %295 = vmatprep.subr.bf16.mxu0 0
    %296 = vmatpush1.bf16.msra.mxu0 0
    %297 = vmatprep.subr.bf16.mxu0 0
    %298 = vmatpush1.bf16.msra.mxu0 0
    %299 = vmatprep.subr.bf16.mxu0 0
    %300 = vmatpush1.bf16.msra.mxu0 0
    %301 = vmatprep.subr.bf16.mxu0 0
    %302 = vmatpush1.bf16.msra.mxu0 0
    %303 = vmatprep.subr.bf16.mxu0 0
    %304 = vmatpush1.bf16.msra.mxu0 0
    %305 = vmatprep.subr.bf16.mxu0 0
    %306 = vmatpush1.bf16.msra.mxu0 0
    %307 = vmatprep.subr.bf16.mxu0 0
    %308 = vmatpush1.bf16.msra.mxu0 0
    %309 = vmatprep.subr.bf16.mxu0 0
    %310 = vmatpush1.bf16.msra.mxu0 0
    %311 = vmatprep.mubr.bf16.mxu0 0
    %312 = vmatmul.mubr.bf16.gmra.mrb[0].mxu0 %v207
    %v313 = vpop.f32.mrb[0].mxu0
    %v314 = vadd.f32 %v229, %v313
    %v315 = vpop.f32.mrb[0].mxu0
    %v316 = vpop.f32.mrb[0].mxu0
    %v317 = vadd.f32 %v229, %v316
    %v318 = vpop.f32.mrb[0].mxu0
    %319 = vdwg.mxu0
    %v320 = vmul.f32 %v314, 0.01
    %v321 = vmul.f32 %v317, 0.01
    %v322 = vmax.f32 %v314, %v320
    %v323 = vmax.f32 %v317, %v321
    %v324 = vpack.c.bf16 %v323, %v322
    %v325 = vld [vmem:[#allocation8] sm:$0xf]
    %v326 = vld [vmem:[#allocation8 + $0x4] sm:$0xf]
    %v327 = vld [vmem:[#allocation8 + $0x8] sm:$0xf]
    %v328 = vld [vmem:[#allocation8 + $0xc] sm:$0xf]
    %v329 = vld [vmem:[#allocation8 + $0x10] sm:$0xf]
    %v330 = vld [vmem:[#allocation8 + $0x14] sm:$0xf]
    %v331 = vld [vmem:[#allocation8 + $0x18] sm:$0xf]
    %v332 = vld [vmem:[#allocation8 + $0x1c] sm:$0xf]
    %v333 = vld [vmem:[#allocation8 + $0x20] sm:$0xf]
    %v334 = vld [vmem:[#allocation8 + $0x24] sm:$0xf]
    %v335 = vld [vmem:[#allocation8 + $0x28] sm:$0xf]
    %v336 = vld [vmem:[#allocation8 + $0x2c] sm:$0xf]
    %v337 = vld [vmem:[#allocation8 + $0x30] sm:$0xf]
    %v338 = vld [vmem:[#allocation8 + $0x34] sm:$0xf]
    %v339 = vld [vmem:[#allocation8 + $0x38] sm:$0xf]
    %v340 = vld [vmem:[#allocation8 + $0x3c] sm:$0xf]
    %v341 = vld [vmem:[%s6] sm:$0x1]
    %v343 = vlaneseq
    %v344 = vshrl.u32 %v343, 7
    %v345 = vsub.s32 0, %v344
    %v346 = vrot.slane %v341, %v345
    %v364 = vunpack.c.l.b16 %v325
    %v365 = vunpack.c.l.b16 %v326
    %v366 = vunpack.c.l.b16 %v327
    %v367 = vunpack.c.l.b16 %v328
    %v368 = vunpack.c.l.b16 %v329
    %v369 = vunpack.c.l.b16 %v330
    %v370 = vunpack.c.l.b16 %v331
    %v371 = vunpack.c.l.b16 %v332
    %v372 = vunpack.c.l.b16 %v333
    %v373 = vunpack.c.l.b16 %v334
    %v374 = vunpack.c.l.b16 %v335
    %v375 = vunpack.c.l.b16 %v336
    %v376 = vunpack.c.l.b16 %v337
    %v377 = vunpack.c.l.b16 %v338
    %v378 = vunpack.c.l.b16 %v339
    %v379 = vunpack.c.l.b16 %v340
    %v380 = vpack.c.b16 %v365, %v364
    %v381 = vpack.c.b16 %v367, %v366
    %v382 = vpack.c.b16 %v369, %v368
    %v383 = vpack.c.b16 %v371, %v370
    %v384 = vpack.c.b16 %v373, %v372
    %v385 = vpack.c.b16 %v375, %v374
    %v386 = vpack.c.b16 %v377, %v376
    %v387 = vpack.c.b16 %v379, %v378
    %396 = vmatprep.subr.bf16.mxu0 0
    %397 = vmatpush1.bf16.msra.mxu0 %v380
    %398 = vmatprep.subr.bf16.mxu0 0
    %399 = vmatpush1.bf16.msra.mxu0 %v381
    %400 = vmatprep.subr.bf16.mxu0 0
    %401 = vmatpush1.bf16.msra.mxu0 %v382
    %402 = vmatprep.subr.bf16.mxu0 0
    %403 = vmatpush1.bf16.msra.mxu0 %v383
    %404 = vmatprep.subr.bf16.mxu0 0
    %405 = vmatpush1.bf16.msra.mxu0 %v384
    %406 = vmatprep.subr.bf16.mxu0 0
    %407 = vmatpush1.bf16.msra.mxu0 %v385
    %408 = vmatprep.subr.bf16.mxu0 0
    %409 = vmatpush1.bf16.msra.mxu0 %v386
    %410 = vmatprep.subr.bf16.mxu0 0
    %411 = vmatpush1.bf16.msra.mxu0 %v387
    %412 = vmatprep.subr.bf16.mxu0 0
    %413 = vmatpush1.bf16.msra.mxu0 0
    %414 = vmatprep.subr.bf16.mxu0 0
    %415 = vmatpush1.bf16.msra.mxu0 0
    %416 = vmatprep.subr.bf16.mxu0 0
    %417 = vmatpush1.bf16.msra.mxu0 0
    %418 = vmatprep.subr.bf16.mxu0 0
    %419 = vmatpush1.bf16.msra.mxu0 0
    %420 = vmatprep.subr.bf16.mxu0 0
    %421 = vmatpush1.bf16.msra.mxu0 0
    %422 = vmatprep.subr.bf16.mxu0 0
    %423 = vmatpush1.bf16.msra.mxu0 0
    %424 = vmatprep.subr.bf16.mxu0 0
    %425 = vmatpush1.bf16.msra.mxu0 0
    %426 = vmatprep.subr.bf16.mxu0 0
    %427 = vmatpush1.bf16.msra.mxu0 0
    %428 = vmatprep.mubr.bf16.mxu0 0
    %429 = vmatmul.mubr.bf16.gmra.mrb[0].mxu0 %v324
    %v430 = vpop.f32.mrb[0].mxu0
    %v431 = vadd.f32 %v346, %v430
    %v432 = vpop.f32.mrb[0].mxu0
    %v433 = vpop.f32.mrb[0].mxu0
    %v434 = vadd.f32 %v346, %v433
    %v435 = vpop.f32.mrb[0].mxu0
    %436 = vdwg.mxu0
    %437 = vst [vmem:[#allocation10] sm:$0xff] %v431
    %438 = vst [vmem:[#allocation10 + $0x8] sm:$0xff] %v434
    // Predicated region
    $region46: #{tpu_custom_call.1} parent=1 // pred_check
      _
    $region47: #{tpu_custom_call.1} parent=1 // pred_check_branch
      %440 = sbr.rel (0) target = $region49
    $region48: #{tpu_custom_call.1} parent=1 // pred_region
      %s442 = ssub.s32 256, 256
      %443 = vsyncadd [#allocation4], %s442
      %s444 = sshll.u32 [#allocation10], 4
      %s445 = int_to_ptr.vmem [resolvable:$true] %s444
      %450 = dma.vmem_to_hbm [thread:$0]  %s445, 256, %s7, [#allocation4], 128, 128, 8
    $region49: #{tpu_custom_call.1} parent=1 // pred_fallthru
      _
    // Predicated region
    $region50: #{tpu_custom_call.1} parent=1 // pred_check
      _
    $region51: #{tpu_custom_call.1} parent=1 // pred_check_branch
      %452 = sbr.rel (0) target = $region53
    $region52: #{tpu_custom_call.1} parent=1 // pred_region
      %453 = dma.done [#allocation4], 256
    $region53: #{tpu_custom_call.1} parent=1 // pred_fallthru
      _
    %454 = vsyncpa [#allocation3], 1
    %455 = vsyncpa [#allocation6], 1
    %456 = vsyncpa [#allocation9], 1
    %457 = vsyncpa [#allocation4], 1

</llo_original>
